<compile_context>
chip_gen: v7x
topology: tpu7x:2x2x1
jax: 0.10.0
libtpu: 0.0.40
codegen_flags: <defaults>
</compile_context>

<pallas_src>
import jax
import jax.numpy as jnp
from jax.experimental import pallas as pl
from jax.experimental.pallas import tpu as pltpu


# ----------------------------------------------------------------------------
# Kernel
# ----------------------------------------------------------------------------
def _mlp_kernel(x_ref, w1_ref, w2_ref, w3_ref, o_ref):
    # Fused 3-layer MLP: relu(relu(relu(x@W1)@W2)@W3).
    # bf16 operands into the MXU, f32 accumulation + f32 ReLU.
    x = x_ref[...].astype(jnp.bfloat16)          # no-op if producer sends bf16
    h = jnp.maximum(
        jnp.dot(x, w1_ref[...], preferred_element_type=jnp.float32), 0.0)
    h = jnp.maximum(
        jnp.dot(h.astype(jnp.bfloat16), w2_ref[...],
                preferred_element_type=jnp.float32), 0.0)
    h = jnp.maximum(
        jnp.dot(h.astype(jnp.bfloat16), w3_ref[...],
                preferred_element_type=jnp.float32), 0.0)
    o_ref[...] = h.astype(o_ref.dtype)


# ----------------------------------------------------------------------------
# Param handling
# ----------------------------------------------------------------------------
def prepare_params(pytorch_layout_params):
    """One-time canonicalization: PyTorch (out, in) f32 -> (in, out) bf16.

    Do this once when the model is built/loaded, NOT per forward call.
    """
    return tuple(jnp.asarray(w, jnp.float32).T.astype(jnp.bfloat16)
                 for w in pytorch_layout_params)


def init_main_net_params(key, in_features, features=(12, 128, 12)):
    """Kaiming-uniform-like init (mimics get_optimal_inner_init(ReLU)) in
    PyTorch (out, in) layout.  bound = sqrt(6/fan_in)."""
    dims = (in_features,) + tuple(features)
    params = []
    for fin, fout in zip(dims[:-1], dims[1:]):
        key, sub = jax.random.split(key)
        bound = jnp.sqrt(6.0 / fin)
        params.append(
            jax.random.uniform(sub, (fout, fin), jnp.float32, -bound, bound))
    return params


# ----------------------------------------------------------------------------
# Tile-size selection (generation aware)
# ----------------------------------------------------------------------------
def _default_block_b():
    """Max batch tile per TPU generation.

    8192 keeps the per-tile VMEM footprint (double-buffered x/out + (bt,128)
    f32/bf16 intermediates ~= 10 MB) under v5e's 16 MiB scoped default; v6e/v7x
    have a 32 MiB scoped default so 16384 (~20 MB) fits without raising
    vmem_limit_bytes.
    """
    try:
        kind = jax.devices()[0].device_kind.lower()
    except Exception:  # pragma: no cover - defensive, never fail dispatch
        kind = ""
    if ("v6" in kind) or ("v7" in kind):
        return 16384
    return 8192  # v5e / unknown: conservative


def _choose_bt(B, block_b):
    """8-aligned batch tile giving >= 2 (even) balanced grid steps, <= block_b.

    An even, balanced step count lets the 'parallel' batch axis shard across
    both v7x TensorCores; on single-TC chips the extra step costs ~0.35 us.
    """
    steps = max(2, pl.cdiv(B, block_b))
    if steps % 2:
        steps += 1
    bt = ((pl.cdiv(B, steps) + 7) // 8) * 8
    return max(8, min(bt, block_b))


# ----------------------------------------------------------------------------
# Forward
# ----------------------------------------------------------------------------
def _jax_forward(x, params_t, out_dtype):
    """Fused plain-JAX path for tiny batches (same numerics as the kernel)."""
    h = x
    for w in params_t:
        h = jnp.maximum(
            jnp.dot(h.astype(jnp.bfloat16), w,
                    preferred_element_type=jnp.float32), 0.0)
    return h.astype(out_dtype)


def state_net_forward(state, params_t, *, block_b=None, min_pallas_batch=512,
                      use_pallas=None):
    """StateNet.forward: x = main_net(state['joint_obs']).

    params_t: canonical (in, out) bf16 weights from prepare_params().
    joint_obs may be f32 or bf16; passing bf16 from the producer halves input
    HBM traffic (the kernel casts operands itself, no wrapper-side cast op).
    """
    x = state["joint_obs"]                       # (B, history_len * in_features)
    w1, w2, w3 = params_t
    B, in_dim = x.shape
    out_dim = w3.shape[1]
    out_dtype = x.dtype

    if use_pallas is None:
        use_pallas = B >= min_pallas_batch
    if not use_pallas:
        # Launch + per-step fixed costs dominate at small B; let XLA fuse it.
        return _jax_forward(x, params_t, out_dtype)

    if block_b is None:
        block_b = _default_block_b()
    bt = _choose_bt(B, block_b)
    grid = (pl.cdiv(B, bt),)

    return pl.pallas_call(
        _mlp_kernel,
        out_shape=jax.ShapeDtypeStruct((B, out_dim), out_dtype),
        grid=grid,
        in_specs=[
            pl.BlockSpec((bt, in_dim), lambda i: (i, 0)),   # x: tiled over batch
            pl.BlockSpec(w1.shape, lambda i: (0, 0)),       # weights: VMEM-resident
            pl.BlockSpec(w2.shape, lambda i: (0, 0)),
            pl.BlockSpec(w3.shape, lambda i: (0, 0)),
        ],
        out_specs=pl.BlockSpec((bt, out_dim), lambda i: (i, 0)),
        compiler_params=pltpu.CompilerParams(
            dimension_semantics=("parallel",)),             # 2 TCs on v7x
    )(x, w1, w2, w3)


# ----------------------------------------------------------------------------
# References
# ----------------------------------------------------------------------------
def reference_forward_bf16(state, params_t):
    """Pure-JAX reference with the same numerics (bf16 operands, f32 accum)."""
    return _jax_forward(state["joint_obs"], params_t,
                        state["joint_obs"].dtype)


def reference_forward_f32(state, params_pt):
    """Full-f32 reference matching PyTorch main_net numerics (loose-tol check)."""
    x = jnp.asarray(state["joint_obs"], jnp.float32)
    for w in params_pt:                              # PyTorch (out, in) layout
        x = jnp.maximum(x @ jnp.asarray(w, jnp.float32).T, 0.0)
    return x


# ----------------------------------------------------------------------------
# Demo / self-check
# ----------------------------------------------------------------------------
if __name__ == "__main__":
    key = jax.random.PRNGKey(0)

    history_len = 1
    in_features = 32          # stand-in for CNN_out_features
    net_in = history_len * in_features

    kx, kp, kx2 = jax.random.split(key, 3)
    params_pt = init_main_net_params(kp, net_in)   # PyTorch (out, in) layout
    params = prepare_params(params_pt)             # one-time: (in, out) bf16

    # --- small batch (typical RL inference shape); force the Pallas path so
    #     the kernel itself is exercised (auto-dispatch would pick plain JAX).
    batch = 8
    joints = jax.random.normal(kx, (batch, net_in), dtype=jnp.float32)
    state = {"joint_obs": joints}

    out = jax.block_until_ready(
        state_net_forward(state, params, use_pallas=True))
    assert out.shape == (batch, 12), out.shape

    ref_bf16 = reference_forward_bf16(state, params)
    ref_f32 = reference_forward_f32(state, params_pt)
    assert jnp.allclose(out, ref_bf16.astype(out.dtype), atol=1e-2, rtol=1e-2), \
        "mismatch vs bf16-path reference"
    assert jnp.allclose(out, ref_f32, atol=5e-2, rtol=5e-2), \
        "mismatch vs f32 PyTorch-style reference"

    # --- larger, non-multiple-of-8 batch: exercises the tiled/pipelined path,
    #     the >=2-step balanced grid and the padded tail tile's masked writes.
    batch2 = 4100
    joints2 = jax.random.normal(kx2, (batch2, net_in), dtype=jnp.float32)
    state2 = {"joint_obs": joints2}

    out2 = jax.block_until_ready(state_net_forward(state2, params))
    assert out2.shape == (batch2, 12), out2.shape
    ref2 = reference_forward_bf16(state2, params)
    assert jnp.allclose(out2, ref2.astype(out2.dtype), atol=1e-2, rtol=1e-2), \
        "mismatch vs reference (tiled path)"

    print("KERNEL_OK")
</pallas_src>

<mosaic_0001>
module attributes {stable_mosaic.version = 11 : i64} {
  func.func @_mlp_kernel(%arg0: i32, %arg1: memref<8x32xf32, #tpu.memory_space<vmem>>, %arg2: memref<32x12xbf16, #tpu.memory_space<vmem>>, %arg3: memref<12x128xbf16, #tpu.memory_space<vmem>>, %arg4: memref<128x12xbf16, #tpu.memory_space<vmem>>, %arg5: memref<8x12xf32, #tpu.memory_space<vmem>>) attributes {dimension_semantics = [#tpu.dimension_semantics<parallel>], iteration_bounds = array<i64: 1>, scalar_prefetch = 0 : i64, scratch_operands = 0 : i64, tpu.core_type = #tpu.core_type<tc>, window_params = [{transform_indices = @transform_0, window_bounds = array<i64: 8, 32>}, {pipeline_mode = #tpu.pipeline_mode<synchronous>, transform_indices = @transform_1, window_bounds = array<i64: 32, 12>}, {pipeline_mode = #tpu.pipeline_mode<synchronous>, transform_indices = @transform_2, window_bounds = array<i64: 12, 128>}, {pipeline_mode = #tpu.pipeline_mode<synchronous>, transform_indices = @transform_3, window_bounds = array<i64: 128, 12>}, {transform_indices = @transform_4, window_bounds = array<i64: 8, 12>}]} {
    %c0 = arith.constant 0 : index
    %c0_0 = arith.constant 0 : index
    %0 = vector.load %arg1[%c0, %c0_0] : memref<8x32xf32, #tpu.memory_space<vmem>>, vector<8x32xf32>
    %1 = arith.truncf %0 : vector<8x32xf32> to vector<8x32xbf16>
    %c0_1 = arith.constant 0 : index
    %c0_2 = arith.constant 0 : index
    %2 = vector.load %arg2[%c0_1, %c0_2] : memref<32x12xbf16, #tpu.memory_space<vmem>>, vector<32x12xbf16>
    %cst = arith.constant dense<0.000000e+00> : vector<8x12xf32>
    %3 = tpu.matmul %1, %2, %cst {dimension_numbers = #tpu.dot_dimension_numbers<[1], [0], [0], [1], [0, 0, 1, 1], [], []>} : vector<8x32xbf16>, vector<32x12xbf16>, vector<8x12xf32> -> vector<8x12xf32>
    %cst_3 = arith.constant 0.000000e+00 : f32
    %4 = vector.broadcast %cst_3 : f32 to vector<8x12xf32>
    %5 = arith.maximumf %3, %4 : vector<8x12xf32>
    %6 = arith.truncf %5 : vector<8x12xf32> to vector<8x12xbf16>
    %c0_4 = arith.constant 0 : index
    %c0_5 = arith.constant 0 : index
    %7 = vector.load %arg3[%c0_4, %c0_5] : memref<12x128xbf16, #tpu.memory_space<vmem>>, vector<12x128xbf16>
    %cst_6 = arith.constant dense<0.000000e+00> : vector<8x128xf32>
    %8 = tpu.matmul %6, %7, %cst_6 {dimension_numbers = #tpu.dot_dimension_numbers<[1], [0], [0], [1], [0, 0, 1, 1], [], []>} : vector<8x12xbf16>, vector<12x128xbf16>, vector<8x128xf32> -> vector<8x128xf32>
    %cst_7 = arith.constant 0.000000e+00 : f32
    %9 = vector.broadcast %cst_7 : f32 to vector<8x128xf32>
    %10 = arith.maximumf %8, %9 : vector<8x128xf32>
    %11 = arith.truncf %10 : vector<8x128xf32> to vector<8x128xbf16>
    %c0_8 = arith.constant 0 : index
    %c0_9 = arith.constant 0 : index
    %12 = vector.load %arg4[%c0_8, %c0_9] : memref<128x12xbf16, #tpu.memory_space<vmem>>, vector<128x12xbf16>
    %cst_10 = arith.constant dense<0.000000e+00> : vector<8x12xf32>
    %13 = tpu.matmul %11, %12, %cst_10 {dimension_numbers = #tpu.dot_dimension_numbers<[1], [0], [0], [1], [0, 0, 1, 1], [], []>} : vector<8x128xbf16>, vector<128x12xbf16>, vector<8x12xf32> -> vector<8x12xf32>
    %cst_11 = arith.constant 0.000000e+00 : f32
    %14 = vector.broadcast %cst_11 : f32 to vector<8x12xf32>
    %15 = arith.maximumf %13, %14 : vector<8x12xf32>
    %c0_12 = arith.constant 0 : index
    %c0_13 = arith.constant 0 : index
    %16 = vector.load %arg5[%c0_12, %c0_13] : memref<8x12xf32, #tpu.memory_space<vmem>>, vector<8x12xf32>
    tpu.vector_store %arg5[%c0_12, %c0_13], %15 {strides = array<i32>} : memref<8x12xf32, #tpu.memory_space<vmem>>, vector<8x12xf32>,
    return
  }
  func.func @transform_0(%arg0: i32) -> (i32, i32) {
    %c0_i32 = arith.constant 0 : i32
    %c0_i32_0 = arith.constant 0 : i32
    return %arg0, %c0_i32 : i32, i32
  }
  func.func @transform_1(%arg0: i32) -> (i32, i32) {
    %c0_i32 = arith.constant 0 : i32
    %c0_i32_0 = arith.constant 0 : i32
    %c0_i32_1 = arith.constant 0 : i32
    return %c0_i32, %c0_i32_0 : i32, i32
  }
  func.func @transform_2(%arg0: i32) -> (i32, i32) {
    %c0_i32 = arith.constant 0 : i32
    %c0_i32_0 = arith.constant 0 : i32
    %c0_i32_1 = arith.constant 0 : i32
    return %c0_i32, %c0_i32_0 : i32, i32
  }
  func.func @transform_3(%arg0: i32) -> (i32, i32) {
    %c0_i32 = arith.constant 0 : i32
    %c0_i32_0 = arith.constant 0 : i32
    %c0_i32_1 = arith.constant 0 : i32
    return %c0_i32, %c0_i32_0 : i32, i32
  }
  func.func @transform_4(%arg0: i32) -> (i32, i32) {
    %c0_i32 = arith.constant 0 : i32
    %c0_i32_0 = arith.constant 0 : i32
    return %arg0, %c0_i32 : i32, i32
  }
}

</mosaic_0001>

<llo_original>
// kernel: tpu_custom_call.1
$region0: #{tpu_custom_call.1}
  #allocation0 [shape = 'u32[]', space=smem, size = 0x4, offset = 0x4, fixed_abs, tag = 'smem constant byte address 0x4 - core index']
  #allocation1 [shape = 'u32[144,128]{1,0:T(1,128)}', space=vmem, size = 0x12000, scoped, tag = 'internal scratch']
  %s0 = inlined_call_operand.vmem [shape: f32[8,32], index: 0, kind: input, shape index: {}]
  %s1 = inlined_call_operand.vmem [shape: bf16[32,12], index: 1, kind: input, shape index: {}]
  %s2 = inlined_call_operand.vmem [shape: bf16[12,128], index: 2, kind: input, shape index: {}]
  %s3 = inlined_call_operand.vmem [shape: bf16[128,12], index: 3, kind: input, shape index: {}]
  %s4 = inlined_call_operand.hbm [shape: f32[8,12], index: 4, kind: output, shape index: {}]
  %s5 = sld [smem:[#allocation0]]
  $region26: #{tpu_custom_call.1} parent=0
    _
  %s7 = ssub.s32 1, %s5
  %s8 = scalar_select 0, %s7, %s5
  $region1: #{tpu_custom_call.1} parent=0
    #allocation2 [shape = 'u8[4096]{0}', space=vmem, size = 0x1000, scoped, tag = 'output window, operand 0, single buffered']
    #allocation3 [shape = 's32[1]{0}', space=sflag, size = 0x4, scoped, tag = 'scoped memory for tpu_custom_call.1']
    %9 = vsyncpa [#allocation3], 0
    // Predicated region
    $region2: #{tpu_custom_call.1} parent=1 // pred_check
      _
    $region3: #{tpu_custom_call.1} parent=1 // pred_check_branch
      %11 = sbr.rel (0) target = $region5
    $region4: #{tpu_custom_call.1} parent=1 // pred_region
      _
    $region5: #{tpu_custom_call.1} parent=1 // pred_fallthru
      _
    // Predicated region
    $region6: #{tpu_custom_call.1} parent=1 // pred_check
      _
    $region7: #{tpu_custom_call.1} parent=1 // pred_check_branch
      %13 = sbr.rel (0) target = $region9
    $region8: #{tpu_custom_call.1} parent=1 // pred_region
      _
    $region9: #{tpu_custom_call.1} parent=1 // pred_fallthru
      _
    // Predicated region
    $region10: #{tpu_custom_call.1} parent=1 // pred_check
      _
    $region11: #{tpu_custom_call.1} parent=1 // pred_check_branch
      %15 = sbr.rel (0) target = $region13
    $region12: #{tpu_custom_call.1} parent=1 // pred_region
      _
    $region13: #{tpu_custom_call.1} parent=1 // pred_fallthru
      _
    // Predicated region
    $region14: #{tpu_custom_call.1} parent=1 // pred_check
      _
    $region15: #{tpu_custom_call.1} parent=1 // pred_check_branch
      %17 = sbr.rel (0) target = $region17
    $region16: #{tpu_custom_call.1} parent=1 // pred_region
      _
    $region17: #{tpu_custom_call.1} parent=1 // pred_fallthru
      _
    %v19 = vld [vmem:[%s0] sm:$0xff]
    %v20 = vpack.c.bf16 %v19, %v19
    %v21 = vld [vmem:[%s1] sm:$0xf]
    %v22 = vld [vmem:[%s1 + $0x4] sm:$0xf]
    %v23 = vld [vmem:[%s1 + $0x8] sm:$0xf]
    %v24 = vld [vmem:[%s1 + $0xc] sm:$0xf]
    %v29 = vunpack.c.l.b16 %v21
    %v30 = vunpack.c.l.b16 %v22
    %v31 = vunpack.c.l.b16 %v23
    %v32 = vunpack.c.l.b16 %v24
    %v33 = vpack.c.b16 %v30, %v29
    %v34 = vpack.c.b16 %v32, %v31
    %vm37 = vcmask 261120
    %v39 = vsel %vm37, %v20, 0
    %41 = vmatprep.subr.bf16.mxu0 0
    %42 = vmatpush1.bf16.msra.mxu0 %v33
    %43 = vmatprep.subr.bf16.mxu0 0
    %44 = vmatpush1.bf16.msra.mxu0 %v34
    %45 = vmatprep.subr.bf16.mxu0 0
    %46 = vmatpush1.bf16.msra.mxu0 0
    %47 = vmatprep.subr.bf16.mxu0 0
    %48 = vmatpush1.bf16.msra.mxu0 0
    %49 = vmatprep.subr.bf16.mxu0 0
    %50 = vmatpush1.bf16.msra.mxu0 0
    %51 = vmatprep.subr.bf16.mxu0 0
    %52 = vmatpush1.bf16.msra.mxu0 0
    %53 = vmatprep.subr.bf16.mxu0 0
    %54 = vmatpush1.bf16.msra.mxu0 0
    %55 = vmatprep.subr.bf16.mxu0 0
    %56 = vmatpush1.bf16.msra.mxu0 0
    %57 = vmatprep.subr.bf16.mxu0 0
    %58 = vmatpush1.bf16.msra.mxu0 0
    %59 = vmatprep.subr.bf16.mxu0 0
    %60 = vmatpush1.bf16.msra.mxu0 0
    %61 = vmatprep.subr.bf16.mxu0 0
    %62 = vmatpush1.bf16.msra.mxu0 0
    %63 = vmatprep.subr.bf16.mxu0 0
    %64 = vmatpush1.bf16.msra.mxu0 0
    %65 = vmatprep.subr.bf16.mxu0 0
    %66 = vmatpush1.bf16.msra.mxu0 0
    %67 = vmatprep.subr.bf16.mxu0 0
    %68 = vmatpush1.bf16.msra.mxu0 0
    %69 = vmatprep.subr.bf16.mxu0 0
    %70 = vmatpush1.bf16.msra.mxu0 0
    %71 = vmatprep.subr.bf16.mxu0 0
    %72 = vmatpush1.bf16.msra.mxu0 0
    %73 = vmatprep.mubr.bf16.mxu0 0
    %74 = vmatmul.mubr.bf16.gmra.mrb[0].mxu0 %v39
    %v75 = vpop.f32.mrb[0].mxu0
    %v76 = vadd.f32 0.0, %v75
    %v77 = vpop.f32.mrb[0].mxu0
    %v78 = vpop.f32.mrb[0].mxu0
    %v79 = vpop.f32.mrb[0].mxu0
    %80 = vdwg.mxu0
    %v81 = vmax.f32 %v76, 0.0
    %v82 = vpack.c.bf16 %v81, %v81
    %v83 = vld [vmem:[%s2] sm:$0xf]
    %v84 = vld [vmem:[%s2 + $0x4] sm:$0x3]
    %v87 = vunpack.c.l.b16 %v83
    %v88 = vunpack.c.l.b16 %v84
    %v89 = vpack.c.b16 %v88, %v87
    %vm90 = vcmask 97280
    %v92 = vsel %vm90, %v82, 0
    %vm94 = vcmask 1045504
    %v96 = vsel %vm94, %v89, 0
    %98 = vmatprep.subr.bf16.mxu0 0
    %99 = vmatpush1.bf16.msra.mxu0 %v96
    %100 = vmatprep.subr.bf16.mxu0 0
    %101 = vmatpush1.bf16.msra.mxu0 0
    %102 = vmatprep.subr.bf16.mxu0 0
    %103 = vmatpush1.bf16.msra.mxu0 0
    %104 = vmatprep.subr.bf16.mxu0 0
    %105 = vmatpush1.bf16.msra.mxu0 0
    %106 = vmatprep.subr.bf16.mxu0 0
    %107 = vmatpush1.bf16.msra.mxu0 0
    %108 = vmatprep.subr.bf16.mxu0 0
    %109 = vmatpush1.bf16.msra.mxu0 0
    %110 = vmatprep.subr.bf16.mxu0 0
    %111 = vmatpush1.bf16.msra.mxu0 0
    %112 = vmatprep.subr.bf16.mxu0 0
    %113 = vmatpush1.bf16.msra.mxu0 0
    %114 = vmatprep.subr.bf16.mxu0 0
    %115 = vmatpush1.bf16.msra.mxu0 0
    %116 = vmatprep.subr.bf16.mxu0 0
    %117 = vmatpush1.bf16.msra.mxu0 0
    %118 = vmatprep.subr.bf16.mxu0 0
    %119 = vmatpush1.bf16.msra.mxu0 0
    %120 = vmatprep.subr.bf16.mxu0 0
    %121 = vmatpush1.bf16.msra.mxu0 0
    %122 = vmatprep.subr.bf16.mxu0 0
    %123 = vmatpush1.bf16.msra.mxu0 0
    %124 = vmatprep.subr.bf16.mxu0 0
    %125 = vmatpush1.bf16.msra.mxu0 0
    %126 = vmatprep.subr.bf16.mxu0 0
    %127 = vmatpush1.bf16.msra.mxu0 0
    %128 = vmatprep.subr.bf16.mxu0 0
    %129 = vmatpush1.bf16.msra.mxu0 0
    %130 = vmatprep.mubr.bf16.mxu0 0
    %131 = vmatmul.mubr.bf16.gmra.mrb[0].mxu0 %v92
    %v132 = vpop.f32.mrb[0].mxu0
    %v133 = vadd.f32 0.0, %v132
    %v134 = vpop.f32.mrb[0].mxu0
    %v135 = vpop.f32.mrb[0].mxu0
    %v136 = vpop.f32.mrb[0].mxu0
    %137 = vdwg.mxu0
    %v138 = vmax.f32 %v133, 0.0
    %v139 = vpack.c.bf16 %v138, %v138
    %v140 = vld [vmem:[%s3] sm:$0xf]
    %v141 = vld [vmem:[%s3 + $0x4] sm:$0xf]
    %v142 = vld [vmem:[%s3 + $0x8] sm:$0xf]
    %v143 = vld [vmem:[%s3 + $0xc] sm:$0xf]
    %v144 = vld [vmem:[%s3 + $0x10] sm:$0xf]
    %v145 = vld [vmem:[%s3 + $0x14] sm:$0xf]
    %v146 = vld [vmem:[%s3 + $0x18] sm:$0xf]
    %v147 = vld [vmem:[%s3 + $0x1c] sm:$0xf]
    %v148 = vld [vmem:[%s3 + $0x20] sm:$0xf]
    %v149 = vld [vmem:[%s3 + $0x24] sm:$0xf]
    %v150 = vld [vmem:[%s3 + $0x28] sm:$0xf]
    %v151 = vld [vmem:[%s3 + $0x2c] sm:$0xf]
    %v152 = vld [vmem:[%s3 + $0x30] sm:$0xf]
    %v153 = vld [vmem:[%s3 + $0x34] sm:$0xf]
    %v154 = vld [vmem:[%s3 + $0x38] sm:$0xf]
    %v155 = vld [vmem:[%s3 + $0x3c] sm:$0xf]
    %v172 = vunpack.c.l.b16 %v140
    %v173 = vunpack.c.l.b16 %v141
    %v174 = vunpack.c.l.b16 %v142
    %v175 = vunpack.c.l.b16 %v143
    %v176 = vunpack.c.l.b16 %v144
    %v177 = vunpack.c.l.b16 %v145
    %v178 = vunpack.c.l.b16 %v146
    %v179 = vunpack.c.l.b16 %v147
    %v180 = vunpack.c.l.b16 %v148
    %v181 = vunpack.c.l.b16 %v149
    %v182 = vunpack.c.l.b16 %v150
    %v183 = vunpack.c.l.b16 %v151
    %v184 = vunpack.c.l.b16 %v152
    %v185 = vunpack.c.l.b16 %v153
    %v186 = vunpack.c.l.b16 %v154
    %v187 = vunpack.c.l.b16 %v155
    %v188 = vpack.c.b16 %v173, %v172
    %v189 = vpack.c.b16 %v175, %v174
    %v190 = vpack.c.b16 %v177, %v176
    %v191 = vpack.c.b16 %v179, %v178
    %v192 = vpack.c.b16 %v181, %v180
    %v193 = vpack.c.b16 %v183, %v182
    %v194 = vpack.c.b16 %v185, %v184
    %v195 = vpack.c.b16 %v187, %v186
    %204 = vmatprep.subr.bf16.mxu0 0
    %205 = vmatpush1.bf16.msra.mxu0 %v188
    %206 = vmatprep.subr.bf16.mxu0 0
    %207 = vmatpush1.bf16.msra.mxu0 %v189
    %208 = vmatprep.subr.bf16.mxu0 0
    %209 = vmatpush1.bf16.msra.mxu0 %v190
    %210 = vmatprep.subr.bf16.mxu0 0
    %211 = vmatpush1.bf16.msra.mxu0 %v191
    %212 = vmatprep.subr.bf16.mxu0 0
    %213 = vmatpush1.bf16.msra.mxu0 %v192
    %214 = vmatprep.subr.bf16.mxu0 0
    %215 = vmatpush1.bf16.msra.mxu0 %v193
    %216 = vmatprep.subr.bf16.mxu0 0
    %217 = vmatpush1.bf16.msra.mxu0 %v194
    %218 = vmatprep.subr.bf16.mxu0 0
    %219 = vmatpush1.bf16.msra.mxu0 %v195
    %220 = vmatprep.subr.bf16.mxu0 0
    %221 = vmatpush1.bf16.msra.mxu0 0
    %222 = vmatprep.subr.bf16.mxu0 0
    %223 = vmatpush1.bf16.msra.mxu0 0
    %224 = vmatprep.subr.bf16.mxu0 0
    %225 = vmatpush1.bf16.msra.mxu0 0
    %226 = vmatprep.subr.bf16.mxu0 0
    %227 = vmatpush1.bf16.msra.mxu0 0
    %228 = vmatprep.subr.bf16.mxu0 0
    %229 = vmatpush1.bf16.msra.mxu0 0
    %230 = vmatprep.subr.bf16.mxu0 0
    %231 = vmatpush1.bf16.msra.mxu0 0
    %232 = vmatprep.subr.bf16.mxu0 0
    %233 = vmatpush1.bf16.msra.mxu0 0
    %234 = vmatprep.subr.bf16.mxu0 0
    %235 = vmatpush1.bf16.msra.mxu0 0
    %236 = vmatprep.mubr.bf16.mxu0 0
    %237 = vmatmul.mubr.bf16.gmra.mrb[0].mxu0 %v139
    %v238 = vpop.f32.mrb[0].mxu0
    %v239 = vadd.f32 0.0, %v238
    %v240 = vpop.f32.mrb[0].mxu0
    %v241 = vpop.f32.mrb[0].mxu0
    %v242 = vpop.f32.mrb[0].mxu0
    %243 = vdwg.mxu0
    %v244 = vmax.f32 %v239, 0.0
    %245 = vst.msk [vmem:[#allocation2] sm:$0xff] %vm90, %v244
    // Predicated region
    $region18: #{tpu_custom_call.1} parent=1 // pred_check
      _
    $region19: #{tpu_custom_call.1} parent=1 // pred_check_branch
      %247 = sbr.rel (0) target = $region21
    $region20: #{tpu_custom_call.1} parent=1 // pred_region
      %s249 = ssub.s32 128, 128
      %250 = vsyncadd [#allocation3], %s249
      %s252 = sshll.u32 [#allocation2], 4
      %s253 = int_to_ptr.vmem [resolvable:$true] %s252
      %255 = dma.vmem_to_hbm [thread:$0]  %s253, 128, %s4, [#allocation3]
    $region21: #{tpu_custom_call.1} parent=1 // pred_fallthru
      _
    // Predicated region
    $region22: #{tpu_custom_call.1} parent=1 // pred_check
      _
    $region23: #{tpu_custom_call.1} parent=1 // pred_check_branch
      %257 = sbr.rel (0) target = $region25
    $region24: #{tpu_custom_call.1} parent=1 // pred_region
      %258 = dma.done [#allocation3], 128
    $region25: #{tpu_custom_call.1} parent=1 // pred_fallthru
      _
    %259 = vsyncpa [#allocation3], 1

</llo_original>
